<compile_context>
chip_gen: v7x
topology: tpu7x:2x2x1
jax: 0.10.0
libtpu: 0.0.40
codegen_flags: <defaults>
</compile_context>

<pallas_src>
import functools

import jax
import jax.numpy as jnp
from jax.experimental import pallas as pl
from jax.experimental.pallas import tpu as pltpu


def _capsule_loss_kernel(x_ref, t_ref, o_ref, *, n_valid_rows):
    # x_ref: (tile_n, L, S)   t_ref: (tile_n, S)   o_ref: (1, 8, S)
    tile_n, _, S = x_ref.shape

    x = x_ref[...].astype(jnp.float32)
    t = t_ref[...].astype(jnp.float32)

    # Norm over l_vec (sublane reduce; hides under DMA on v5e/v6e, see TODO for v7x).
    norms = jnp.sqrt(jnp.sum(x * x, axis=1))          # (tile_n, S)
    diff = norms - t
    err = jnp.exp(2.0 * t) * diff * diff              # weighted squared error

    # Mask tail rows of the last grid step (no wrapper-side padding of N).
    # Static Python check: zero cost when tile_n divides N.
    if n_valid_rows % tile_n != 0:
        row_start = pl.program_id(0) * tile_n
        row_idx = jax.lax.broadcasted_iota(jnp.int32, (tile_n, S), 0) + row_start
        err = jnp.where(row_idx < n_valid_rows, err, 0.0)

    # Row-sum as pure vreg adds over the leading (vreg-batch) axis; store a full
    # 8-sublane lane-dense partial. No in-kernel XLU reduce, no narrow masked store.
    o_ref[0] = err.reshape(tile_n // 8, 8, S).sum(axis=0)


def _default_vmem_limit_bytes():
    cap = None
    try:
        cap = int(getattr(pltpu.get_tpu_info(), "vmem_capacity_bytes", 0)) or None
    except Exception:  # interpret mode / older jax: fall back conservatively
        cap = None
    if cap is None:
        cap = 64 * 1024 * 1024  # conservative: v7x per-TC VMEM
    # Leave headroom for Mosaic-internal scratch; 40-48 MiB is safe on all generations.
    return min(48 * 1024 * 1024, (cap * 3) // 4)


def capsule_loss(inputs, targets, *, tile_n=None, block_bytes=None):
    """CapsuleLoss forward, default path (masks=None, is_focal=False).

    inputs:  (B, K*L, H, W) capsule activations (any float dtype; cast in-kernel)
    targets: (B, K,   H, W) target magnitudes
    """
    B, C, H, W = inputs.shape
    _, K, _, _ = targets.shape
    assert targets.shape == (B, K, H, W)
    assert C % K == 0, "channel dim must be num_capsules * l_vec"
    L = C // K
    S = H * W
    N = B * K
    total = N * S  # true element count the PyTorch .mean() divides by

    # Free reshapes only -- no pad / transpose HBM copy passes.
    x = inputs.reshape(N, L, S)   # keep original dtype -> half the HBM bytes for bf16
    t = targets.reshape(N, S)

    itemsize = jnp.dtype(inputs.dtype).itemsize
    t_itemsize = jnp.dtype(targets.dtype).itemsize

    vmem_limit = _default_vmem_limit_bytes()
    if block_bytes is None:
        # Budget so 2x double-buffered x + 2x t fits comfortably in the scoped limit.
        t_ratio = float(t_itemsize) / float(L * itemsize)
        block_bytes = int(0.375 * vmem_limit / (1.0 + t_ratio))
        block_bytes = max(1 << 20, min(16 << 20, block_bytes))

    if tile_n is None:
        rows = max(8, block_bytes // max(1, L * S * itemsize))
        tile_n = (rows // 8) * 8
    tile_n = max(8, (tile_n // 8) * 8)
    # Never larger than (rounded-up) N.
    tile_n = min(tile_n, ((N + 7) // 8) * 8)
    # v7x megacore: keep at least 2 grid steps when N allows it.
    if N >= 16:
        tile_n = min(tile_n, (((N + 1) // 2 + 7) // 8) * 8)

    grid_n = pl.cdiv(N, tile_n)

    kernel = functools.partial(_capsule_loss_kernel, n_valid_rows=N)

    partials = pl.pallas_call(
        kernel,
        out_shape=jax.ShapeDtypeStruct((grid_n, 8, S), jnp.float32),
        grid=(grid_n,),
        in_specs=[
            # Last two block dims (L, S) equal the full array dims -> (8,128) rule ok.
            pl.BlockSpec((tile_n, L, S), lambda i: (i, 0, 0)),
            # (tile_n, S): tile_n is a multiple of 8, S is the full dim.
            pl.BlockSpec((tile_n, S), lambda i: (i, 0)),
        ],
        out_specs=pl.BlockSpec((1, 8, S), lambda i: (i, 0, 0)),
        compiler_params=pltpu.CompilerParams(
            dimension_semantics=("parallel",),
            vmem_limit_bytes=vmem_limit,
        ),
        cost_estimate=pl.CostEstimate(
            flops=N * S * (2 * L + 5),
            transcendentals=2 * N * S,              # sqrt + exp per element
            bytes_accessed=N * L * S * itemsize + N * S * t_itemsize
                           + grid_n * 8 * S * 4,
        ),
    )(x, t)

    # Tiny final reduction + mean (divide by the TRUE element count).
    return jnp.sum(partials) / jnp.float32(total)


def _ref_loss(inputs, targets, K):
    B, C, H, W = inputs.shape
    L = C // K
    x5 = inputs.reshape(B, K, L, H, W).astype(jnp.float32)
    preds = jnp.sqrt(jnp.sum(x5 ** 2, axis=2))
    t = targets.astype(jnp.float32)
    return jnp.mean(jnp.exp(2.0 * t) * (preds - t) ** 2)


if __name__ == "__main__":
    key = jax.random.PRNGKey(0)
    k1, k2, k3, k4 = jax.random.split(key, 4)

    # Case 1: small shapes consistent with the module: num_keypoints=3 -> K=4 capsules,
    # l_vec=8, batch=2, spatial 16x16 (S=256, lane-aligned; N=8 divides the tile).
    B, K, L, H, W = 2, 4, 8, 16, 16
    inputs = jax.random.normal(k1, (B, K * L, H, W), dtype=jnp.float32)
    targets = 0.5 * jax.random.normal(k2, (B, K, H, W), dtype=jnp.float32)
    loss = jax.block_until_ready(capsule_loss(inputs, targets))
    ref = _ref_loss(inputs, targets, K)
    assert jnp.allclose(loss, ref, rtol=1e-5, atol=1e-5), (loss, ref)

    # Case 2: exercises the no-pad paths: S = 100 (not a multiple of 128, full-dim lane
    # block) and N = 24 rows with a 16-row tile -> 2 grid steps + in-kernel tail mask.
    B2, K2, L2, H2, W2 = 2, 12, 8, 10, 10
    inputs2 = jax.random.normal(k3, (B2, K2 * L2, H2, W2), dtype=jnp.float32)
    targets2 = 0.5 * jax.random.normal(k4, (B2, K2, H2, W2), dtype=jnp.float32)
    loss2 = jax.block_until_ready(capsule_loss(inputs2, targets2))
    ref2 = _ref_loss(inputs2, targets2, K2)
    assert jnp.allclose(loss2, ref2, rtol=1e-5, atol=1e-5), (loss2, ref2)

    print("KERNEL_OK")
</pallas_src>

<mosaic_0001>
module attributes {stable_mosaic.version = 11 : i64} {
  func.func @_capsule_loss_kernel(%arg0: i32, %arg1: memref<8x8x256xf32, #tpu.memory_space<vmem>>, %arg2: memref<8x256xf32, #tpu.memory_space<vmem>>, %arg3: memref<1x8x256xf32, #tpu.memory_space<vmem>>) attributes {dimension_semantics = [#tpu.dimension_semantics<parallel>], iteration_bounds = array<i64: 1>, scalar_prefetch = 0 : i64, scratch_operands = 0 : i64, tpu.core_type = #tpu.core_type<tc>, window_params = [{transform_indices = @transform_0, window_bounds = array<i64: 8, 8, 256>}, {transform_indices = @transform_1, window_bounds = array<i64: 8, 256>}, {transform_indices = @transform_2, window_bounds = array<i64: 1, 8, 256>}]} {
    %c0 = arith.constant 0 : index
    %c0_0 = arith.constant 0 : index
    %c0_1 = arith.constant 0 : index
    %0 = vector.load %arg1[%c0, %c0_0, %c0_1] : memref<8x8x256xf32, #tpu.memory_space<vmem>>, vector<8x8x256xf32>
    %c0_2 = arith.constant 0 : index
    %c0_3 = arith.constant 0 : index
    %1 = vector.load %arg2[%c0_2, %c0_3] : memref<8x256xf32, #tpu.memory_space<vmem>>, vector<8x256xf32>
    %2 = arith.mulf %0, %0 : vector<8x8x256xf32>
    %cst = arith.constant dense<0.000000e+00> : vector<8x256xf32>
    %3 = vector.multi_reduction <add>, %2, %cst [1] : vector<8x8x256xf32> to vector<8x256xf32>
    %4 = math.sqrt %3 : vector<8x256xf32>
    %5 = arith.subf %4, %1 : vector<8x256xf32>
    %cst_4 = arith.constant 2.000000e+00 : f32
    %6 = vector.broadcast %cst_4 : f32 to vector<8x256xf32>
    %7 = arith.mulf %6, %1 : vector<8x256xf32>
    %8 = math.exp %7 : vector<8x256xf32>
    %9 = arith.mulf %8, %5 : vector<8x256xf32>
    %10 = arith.mulf %9, %5 : vector<8x256xf32>
    %11 = vector.shape_cast %10 : vector<8x256xf32> to vector<1x8x256xf32>
    %cst_5 = arith.constant dense<0.000000e+00> : vector<8x256xf32>
    %12 = vector.multi_reduction <add>, %11, %cst_5 [0] : vector<1x8x256xf32> to vector<8x256xf32>
    %c0_6 = arith.constant 0 : index
    %c0_7 = arith.constant 0 : index
    %c0_8 = arith.constant 0 : index
    %13 = vector.load %arg3[%c0_6, %c0_7, %c0_8] : memref<1x8x256xf32, #tpu.memory_space<vmem>>, vector<1x8x256xf32>
    %14 = vector.shape_cast %13 : vector<1x8x256xf32> to vector<8x256xf32>
    %15 = vector.shape_cast %12 : vector<8x256xf32> to vector<1x8x256xf32>
    tpu.vector_store %arg3[%c0_6, %c0_7, %c0_8], %15 {strides = array<i32>} : memref<1x8x256xf32, #tpu.memory_space<vmem>>, vector<1x8x256xf32>,
    return
  }
  func.func @transform_0(%arg0: i32) -> (i32, i32, i32) {
    %c0_i32 = arith.constant 0 : i32
    %c0_i32_0 = arith.constant 0 : i32
    %c0_i32_1 = arith.constant 0 : i32
    return %arg0, %c0_i32, %c0_i32_0 : i32, i32, i32
  }
  func.func @transform_1(%arg0: i32) -> (i32, i32) {
    %c0_i32 = arith.constant 0 : i32
    %c0_i32_0 = arith.constant 0 : i32
    return %arg0, %c0_i32 : i32, i32
  }
  func.func @transform_2(%arg0: i32) -> (i32, i32, i32) {
    %c0_i32 = arith.constant 0 : i32
    %c0_i32_0 = arith.constant 0 : i32
    %c0_i32_1 = arith.constant 0 : i32
    return %arg0, %c0_i32, %c0_i32_0 : i32, i32, i32
  }
}

</mosaic_0001>

<llo_original>
// kernel: tpu_custom_call.1
$region0: #{tpu_custom_call.1}
  #allocation0 [shape = 'u32[]', space=smem, size = 0x4, offset = 0x4, fixed_abs, tag = 'smem constant byte address 0x4 - core index']
  #allocation1 [shape = 'u32[144,128]{1,0:T(1,128)}', space=vmem, size = 0x12000, scoped, tag = 'internal scratch']
  %s0 = inlined_call_operand.hbm [shape: f32[8,8,256], index: 0, kind: input, shape index: {}]
  %s1 = inlined_call_operand.hbm [shape: f32[8,256], index: 1, kind: input, shape index: {}]
  %s2 = inlined_call_operand.hbm [shape: f32[1,8,256], index: 2, kind: output, shape index: {}]
  %s3 = sld [smem:[#allocation0]]
  $region26: #{tpu_custom_call.1} parent=0
    _
  %s5 = ssub.s32 1, %s3
  %s6 = scalar_select 0, %s5, %s3
  $region1: #{tpu_custom_call.1} parent=0
    #allocation2 [shape = 'u8[65536]{0}', space=vmem, size = 0x10000, scoped, tag = 'input window, operand 0, single buffered']
    #allocation3 [shape = 's32[1]{0}', space=sflag, size = 0x4, scoped, tag = 'scoped memory for tpu_custom_call.1']
    #allocation4 [shape = 's32[1]{0}', space=sflag, size = 0x4, scoped, tag = 'scoped memory for tpu_custom_call.1']
    #allocation5 [shape = 'u8[8192]{0}', space=vmem, size = 0x2000, scoped, tag = 'input window, operand 1, single buffered']
    #allocation6 [shape = 's32[1]{0}', space=sflag, size = 0x4, scoped, tag = 'scoped memory for tpu_custom_call.1']
    #allocation7 [shape = 'u8[8192]{0}', space=vmem, size = 0x2000, scoped, tag = 'output window, operand 0, single buffered']
    %7 = vsyncpa [#allocation3], 0
    %8 = vsyncpa [#allocation6], 0
    %9 = vsyncpa [#allocation4], 0
    // Predicated region
    $region2: #{tpu_custom_call.1} parent=1 // pred_check
      _
    $region3: #{tpu_custom_call.1} parent=1 // pred_check_branch
      %11 = sbr.rel (0) target = $region5
    $region4: #{tpu_custom_call.1} parent=1 // pred_region
      %s13 = ssub.s32 2048, 2048
      %14 = vsyncadd [#allocation3], %s13
      %s15 = sshll.u32 [#allocation2], 4
      %s16 = int_to_ptr.vmem [resolvable:$true] %s15
      %21 = dma.hbm_to_vmem [thread:$0]  %s0, 2048, %s16, [#allocation3], 256, 256, 16
    $region5: #{tpu_custom_call.1} parent=1 // pred_fallthru
      _
    // Predicated region
    $region6: #{tpu_custom_call.1} parent=1 // pred_check
      _
    $region7: #{tpu_custom_call.1} parent=1 // pred_check_branch
      %23 = sbr.rel (0) target = $region9
    $region8: #{tpu_custom_call.1} parent=1 // pred_region
      %s25 = ssub.s32 256, 256
      %26 = vsyncadd [#allocation6], %s25
      %s28 = sshll.u32 [#allocation5], 4
      %s29 = int_to_ptr.vmem [resolvable:$true] %s28
      %31 = dma.hbm_to_vmem [thread:$0]  %s1, 256, %s29, [#allocation6]
    $region9: #{tpu_custom_call.1} parent=1 // pred_fallthru
      _
    // Predicated region
    $region10: #{tpu_custom_call.1} parent=1 // pred_check
      _
    $region11: #{tpu_custom_call.1} parent=1 // pred_check_branch
      %33 = sbr.rel (0) target = $region13
    $region12: #{tpu_custom_call.1} parent=1 // pred_region
      %34 = dma.done [#allocation3], 2048
    $region13: #{tpu_custom_call.1} parent=1 // pred_fallthru
      _
    // Predicated region
    $region14: #{tpu_custom_call.1} parent=1 // pred_check
      _
    $region15: #{tpu_custom_call.1} parent=1 // pred_check_branch
      %36 = sbr.rel (0) target = $region17
    $region16: #{tpu_custom_call.1} parent=1 // pred_region
      %37 = dma.done [#allocation6], 256
    $region17: #{tpu_custom_call.1} parent=1 // pred_fallthru
      _
    %v38 = vld [vmem:[#allocation2] sm:$0xff]
    %v39 = vld [vmem:[#allocation2 + $0x8] sm:$0xff]
    %v40 = vld [vmem:[#allocation2 + $0x10] sm:$0xff]
    %v41 = vld [vmem:[#allocation2 + $0x18] sm:$0xff]
    %v42 = vld [vmem:[#allocation2 + $0x20] sm:$0xff]
    %v43 = vld [vmem:[#allocation2 + $0x28] sm:$0xff]
    %v44 = vld [vmem:[#allocation2 + $0x30] sm:$0xff]
    %v45 = vld [vmem:[#allocation2 + $0x38] sm:$0xff]
    %v46 = vld [vmem:[#allocation2 + $0x40] sm:$0xff]
    %v47 = vld [vmem:[#allocation2 + $0x48] sm:$0xff]
    %v48 = vld [vmem:[#allocation2 + $0x50] sm:$0xff]
    %v49 = vld [vmem:[#allocation2 + $0x58] sm:$0xff]
    %v50 = vld [vmem:[#allocation2 + $0x60] sm:$0xff]
    %v51 = vld [vmem:[#allocation2 + $0x68] sm:$0xff]
    %v52 = vld [vmem:[#allocation2 + $0x70] sm:$0xff]
    %v53 = vld [vmem:[#allocation2 + $0x78] sm:$0xff]
    %v54 = vld [vmem:[#allocation5] sm:$0xff]
    %v55 = vld [vmem:[#allocation5 + $0x8] sm:$0xff]
    %v56 = vmul.f32 %v38, %v38
    %v57 = vmul.f32 %v39, %v39
    %v58 = vmul.f32 %v40, %v40
    %v59 = vmul.f32 %v41, %v41
    %v60 = vmul.f32 %v42, %v42
    %v61 = vmul.f32 %v43, %v43
    %v62 = vmul.f32 %v44, %v44
    %v63 = vmul.f32 %v45, %v45
    %v64 = vmul.f32 %v46, %v46
    %v65 = vmul.f32 %v47, %v47
    %v66 = vmul.f32 %v48, %v48
    %v67 = vmul.f32 %v49, %v49
    %v68 = vmul.f32 %v50, %v50
    %v69 = vmul.f32 %v51, %v51
    %v70 = vmul.f32 %v52, %v52
    %v71 = vmul.f32 %v53, %v53
    %v72 = vrot.slane %v56, 4
    %v73 = vadd.f32 %v56, %v72
    %v74 = vrot.slane %v73, 2
    %v75 = vadd.f32 %v73, %v74
    %v76 = vrot.slane %v75, 1
    %v77 = vadd.f32 %v75, %v76
    %v78 = vrot.slane %v57, 4
    %v79 = vadd.f32 %v57, %v78
    %v80 = vrot.slane %v79, 2
    %v81 = vadd.f32 %v79, %v80
    %v82 = vrot.slane %v81, 1
    %v83 = vadd.f32 %v81, %v82
    %v84 = vrot.slane %v58, 4
    %v85 = vadd.f32 %v58, %v84
    %v86 = vrot.slane %v85, 2
    %v87 = vadd.f32 %v85, %v86
    %v88 = vrot.slane %v87, 1
    %v89 = vadd.f32 %v87, %v88
    %v90 = vrot.slane %v59, 4
    %v91 = vadd.f32 %v59, %v90
    %v92 = vrot.slane %v91, 2
    %v93 = vadd.f32 %v91, %v92
    %v94 = vrot.slane %v93, 1
    %v95 = vadd.f32 %v93, %v94
    %v96 = vrot.slane %v60, 4
    %v97 = vadd.f32 %v60, %v96
    %v98 = vrot.slane %v97, 2
    %v99 = vadd.f32 %v97, %v98
    %v100 = vrot.slane %v99, 1
    %v101 = vadd.f32 %v99, %v100
    %v102 = vrot.slane %v61, 4
    %v103 = vadd.f32 %v61, %v102
    %v104 = vrot.slane %v103, 2
    %v105 = vadd.f32 %v103, %v104
    %v106 = vrot.slane %v105, 1
    %v107 = vadd.f32 %v105, %v106
    %v108 = vrot.slane %v62, 4
    %v109 = vadd.f32 %v62, %v108
    %v110 = vrot.slane %v109, 2
    %v111 = vadd.f32 %v109, %v110
    %v112 = vrot.slane %v111, 1
    %v113 = vadd.f32 %v111, %v112
    %v114 = vrot.slane %v63, 4
    %v115 = vadd.f32 %v63, %v114
    %v116 = vrot.slane %v115, 2
    %v117 = vadd.f32 %v115, %v116
    %v118 = vrot.slane %v117, 1
    %v119 = vadd.f32 %v117, %v118
    %v120 = vrot.slane %v64, 4
    %v121 = vadd.f32 %v64, %v120
    %v122 = vrot.slane %v121, 2
    %v123 = vadd.f32 %v121, %v122
    %v124 = vrot.slane %v123, 1
    %v125 = vadd.f32 %v123, %v124
    %v126 = vrot.slane %v65, 4
    %v127 = vadd.f32 %v65, %v126
    %v128 = vrot.slane %v127, 2
    %v129 = vadd.f32 %v127, %v128
    %v130 = vrot.slane %v129, 1
    %v131 = vadd.f32 %v129, %v130
    %v132 = vrot.slane %v66, 4
    %v133 = vadd.f32 %v66, %v132
    %v134 = vrot.slane %v133, 2
    %v135 = vadd.f32 %v133, %v134
    %v136 = vrot.slane %v135, 1
    %v137 = vadd.f32 %v135, %v136
    %v138 = vrot.slane %v67, 4
    %v139 = vadd.f32 %v67, %v138
    %v140 = vrot.slane %v139, 2
    %v141 = vadd.f32 %v139, %v140
    %v142 = vrot.slane %v141, 1
    %v143 = vadd.f32 %v141, %v142
    %v144 = vrot.slane %v68, 4
    %v145 = vadd.f32 %v68, %v144
    %v146 = vrot.slane %v145, 2
    %v147 = vadd.f32 %v145, %v146
    %v148 = vrot.slane %v147, 1
    %v149 = vadd.f32 %v147, %v148
    %v150 = vrot.slane %v69, 4
    %v151 = vadd.f32 %v69, %v150
    %v152 = vrot.slane %v151, 2
    %v153 = vadd.f32 %v151, %v152
    %v154 = vrot.slane %v153, 1
    %v155 = vadd.f32 %v153, %v154
    %v156 = vrot.slane %v70, 4
    %v157 = vadd.f32 %v70, %v156
    %v158 = vrot.slane %v157, 2
    %v159 = vadd.f32 %v157, %v158
    %v160 = vrot.slane %v159, 1
    %v161 = vadd.f32 %v159, %v160
    %v162 = vrot.slane %v71, 4
    %v163 = vadd.f32 %v71, %v162
    %v164 = vrot.slane %v163, 2
    %v165 = vadd.f32 %v163, %v164
    %v166 = vrot.slane %v165, 1
    %v167 = vadd.f32 %v165, %v166
    %v168 = vrsqrt.pop %v77
    %v169 = vmul.f32 %v77, %v168
    %vm170 = vcmp.eq.f32.partialorder %v77, inf
    %v171 = vsel %vm170, %v77, %v169
    %vm172 = vcmp.eq.f32.partialorder %v77, 0.0
    %v173 = vand.u32 %v77, 2147483648
    %v174 = vsel %vm172, %v173, %v171
    %v175 = vrsqrt.pop %v83
    %v176 = vmul.f32 %v83, %v175
    %vm177 = vcmp.eq.f32.partialorder %v83, inf
    %v178 = vsel %vm177, %v83, %v176
    %vm179 = vcmp.eq.f32.partialorder %v83, 0.0
    %v180 = vand.u32 %v83, 2147483648
    %v181 = vsel %vm179, %v180, %v178
    %v182 = vrsqrt.pop %v89
    %v183 = vmul.f32 %v89, %v182
    %vm184 = vcmp.eq.f32.partialorder %v89, inf
    %v185 = vsel %vm184, %v89, %v183
    %vm186 = vcmp.eq.f32.partialorder %v89, 0.0
    %v187 = vand.u32 %v89, 2147483648
    %v188 = vsel %vm186, %v187, %v185
    %v189 = vrsqrt.pop %v95
    %v190 = vmul.f32 %v95, %v189
    %vm191 = vcmp.eq.f32.partialorder %v95, inf
    %v192 = vsel %vm191, %v95, %v190
    %vm193 = vcmp.eq.f32.partialorder %v95, 0.0
    %v194 = vand.u32 %v95, 2147483648
    %v195 = vsel %vm193, %v194, %v192
    %v196 = vrsqrt.pop %v101
    %v197 = vmul.f32 %v101, %v196
    %vm198 = vcmp.eq.f32.partialorder %v101, inf
    %v199 = vsel %vm198, %v101, %v197
    %vm200 = vcmp.eq.f32.partialorder %v101, 0.0
    %v201 = vand.u32 %v101, 2147483648
    %v202 = vsel %vm200, %v201, %v199
    %v203 = vrsqrt.pop %v107
    %v204 = vmul.f32 %v107, %v203
    %vm205 = vcmp.eq.f32.partialorder %v107, inf
    %v206 = vsel %vm205, %v107, %v204
    %vm207 = vcmp.eq.f32.partialorder %v107, 0.0
    %v208 = vand.u32 %v107, 2147483648
    %v209 = vsel %vm207, %v208, %v206
    %v210 = vrsqrt.pop %v113
    %v211 = vmul.f32 %v113, %v210
    %vm212 = vcmp.eq.f32.partialorder %v113, inf
    %v213 = vsel %vm212, %v113, %v211
    %vm214 = vcmp.eq.f32.partialorder %v113, 0.0
    %v215 = vand.u32 %v113, 2147483648
    %v216 = vsel %vm214, %v215, %v213
    %v217 = vrsqrt.pop %v119
    %v218 = vmul.f32 %v119, %v217
    %vm219 = vcmp.eq.f32.partialorder %v119, inf
    %v220 = vsel %vm219, %v119, %v218
    %vm221 = vcmp.eq.f32.partialorder %v119, 0.0
    %v222 = vand.u32 %v119, 2147483648
    %v223 = vsel %vm221, %v222, %v220
    %v224 = vrsqrt.pop %v125
    %v225 = vmul.f32 %v125, %v224
    %vm226 = vcmp.eq.f32.partialorder %v125, inf
    %v227 = vsel %vm226, %v125, %v225
    %vm228 = vcmp.eq.f32.partialorder %v125, 0.0
    %v229 = vand.u32 %v125, 2147483648
    %v230 = vsel %vm228, %v229, %v227
    %v231 = vrsqrt.pop %v131
    %v232 = vmul.f32 %v131, %v231
    %vm233 = vcmp.eq.f32.partialorder %v131, inf
    %v234 = vsel %vm233, %v131, %v232
    %vm235 = vcmp.eq.f32.partialorder %v131, 0.0
    %v236 = vand.u32 %v131, 2147483648
    %v237 = vsel %vm235, %v236, %v234
    %v238 = vrsqrt.pop %v137
    %v239 = vmul.f32 %v137, %v238
    %vm240 = vcmp.eq.f32.partialorder %v137, inf
    %v241 = vsel %vm240, %v137, %v239
    %vm242 = vcmp.eq.f32.partialorder %v137, 0.0
    %v243 = vand.u32 %v137, 2147483648
    %v244 = vsel %vm242, %v243, %v241
    %v245 = vrsqrt.pop %v143
    %v246 = vmul.f32 %v143, %v245
    %vm247 = vcmp.eq.f32.partialorder %v143, inf
    %v248 = vsel %vm247, %v143, %v246
    %vm249 = vcmp.eq.f32.partialorder %v143, 0.0
    %v250 = vand.u32 %v143, 2147483648
    %v251 = vsel %vm249, %v250, %v248
    %v252 = vrsqrt.pop %v149
    %v253 = vmul.f32 %v149, %v252
    %vm254 = vcmp.eq.f32.partialorder %v149, inf
    %v255 = vsel %vm254, %v149, %v253
    %vm256 = vcmp.eq.f32.partialorder %v149, 0.0
    %v257 = vand.u32 %v149, 2147483648
    %v258 = vsel %vm256, %v257, %v255
    %v259 = vrsqrt.pop %v155
    %v260 = vmul.f32 %v155, %v259
    %vm261 = vcmp.eq.f32.partialorder %v155, inf
    %v262 = vsel %vm261, %v155, %v260
    %vm263 = vcmp.eq.f32.partialorder %v155, 0.0
    %v264 = vand.u32 %v155, 2147483648
    %v265 = vsel %vm263, %v264, %v262
    %v266 = vrsqrt.pop %v161
    %v267 = vmul.f32 %v161, %v266
    %vm268 = vcmp.eq.f32.partialorder %v161, inf
    %v269 = vsel %vm268, %v161, %v267
    %vm270 = vcmp.eq.f32.partialorder %v161, 0.0
    %v271 = vand.u32 %v161, 2147483648
    %v272 = vsel %vm270, %v271, %v269
    %v273 = vrsqrt.pop %v167
    %v274 = vmul.f32 %v167, %v273
    %vm275 = vcmp.eq.f32.partialorder %v167, inf
    %v276 = vsel %vm275, %v167, %v274
    %vm277 = vcmp.eq.f32.partialorder %v167, 0.0
    %v278 = vand.u32 %v167, 2147483648
    %v279 = vsel %vm277, %v278, %v276
    %v282 = vrot.slane %v54, 1
    %v283 = vrot.slane %v55, 1
    %v284 = vrot.slane %v54, 2
    %v285 = vrot.slane %v55, 2
    %v286 = vrot.slane %v54, 3
    %v287 = vrot.slane %v55, 3
    %v288 = vrot.slane %v54, 4
    %v289 = vrot.slane %v55, 4
    %v290 = vrot.slane %v54, 5
    %v291 = vrot.slane %v55, 5
    %v292 = vrot.slane %v54, 6
    %v293 = vrot.slane %v55, 6
    %v294 = vrot.slane %v54, 7
    %v295 = vrot.slane %v55, 7
    %v312 = vsub.f32 %v174, %v54
    %v313 = vsub.f32 %v181, %v55
    %v314 = vsub.f32 %v188, %v282
    %v315 = vsub.f32 %v195, %v283
    %v316 = vsub.f32 %v202, %v284
    %v317 = vsub.f32 %v209, %v285
    %v318 = vsub.f32 %v216, %v286
    %v319 = vsub.f32 %v223, %v287
    %v320 = vsub.f32 %v230, %v288
    %v321 = vsub.f32 %v237, %v289
    %v322 = vsub.f32 %v244, %v290
    %v323 = vsub.f32 %v251, %v291
    %v324 = vsub.f32 %v258, %v292
    %v325 = vsub.f32 %v265, %v293
    %v326 = vsub.f32 %v272, %v294
    %v327 = vsub.f32 %v279, %v295
    %v328 = vmul.f32 %v54, 2.0
    %v329 = vmul.f32 %v55, 2.0
    %v330 = vmul.f32 %v328, 1.442695
    %v331 = vpow.pop %v330
    %v332 = vmul.f32 %v329, 1.442695
    %v333 = vpow.pop %v332
    %v350 = vrot.slane %v314, 7
    %vm351 = vcmask 1041409
    %v352 = vsel %vm351, %v350, %v312
    %v353 = vrot.slane %v316, 6
    %vm354 = vcmask 1042434
    %v355 = vsel %vm354, %v353, %v352
    %v356 = vrot.slane %v318, 5
    %vm357 = vcmask 1043459
    %v358 = vsel %vm357, %v356, %v355
    %v359 = vrot.slane %v320, 4
    %vm360 = vcmask 1044484
    %v361 = vsel %vm360, %v359, %v358
    %v362 = vrot.slane %v322, 3
    %vm363 = vcmask 1045509
    %v364 = vsel %vm363, %v362, %v361
    %v365 = vrot.slane %v324, 2
    %vm366 = vcmask 1046534
    %v367 = vsel %vm366, %v365, %v364
    %v368 = vrot.slane %v326, 1
    %vm369 = vcmask 1047559
    %v370 = vsel %vm369, %v368, %v367
    %v371 = vrot.slane %v315, 7
    %v372 = vsel %vm351, %v371, %v313
    %v373 = vrot.slane %v317, 6
    %v374 = vsel %vm354, %v373, %v372
    %v375 = vrot.slane %v319, 5
    %v376 = vsel %vm357, %v375, %v374
    %v377 = vrot.slane %v321, 4
    %v378 = vsel %vm360, %v377, %v376
    %v379 = vrot.slane %v323, 3
    %v380 = vsel %vm363, %v379, %v378
    %v381 = vrot.slane %v325, 2
    %v382 = vsel %vm366, %v381, %v380
    %v383 = vrot.slane %v327, 1
    %v384 = vsel %vm369, %v383, %v382
    %v387 = vmul.f32 %v331, %v370
    %v388 = vmul.f32 %v333, %v384
    %v389 = vmul.f32 %v387, %v370
    %v390 = vmul.f32 %v388, %v384
    %v391 = vadd.f32 %v389, 0.0
    %v392 = vadd.f32 %v390, 0.0
    %393 = vst [vmem:[#allocation7] sm:$0xff] %v391
    %394 = vst [vmem:[#allocation7 + $0x8] sm:$0xff] %v392
    // Predicated region
    $region18: #{tpu_custom_call.1} parent=1 // pred_check
      _
    $region19: #{tpu_custom_call.1} parent=1 // pred_check_branch
      %396 = sbr.rel (0) target = $region21
    $region20: #{tpu_custom_call.1} parent=1 // pred_region
      %s398 = ssub.s32 256, 256
      %399 = vsyncadd [#allocation4], %s398
      %s401 = sshll.u32 [#allocation7], 4
      %s402 = int_to_ptr.vmem [resolvable:$true] %s401
      %404 = dma.vmem_to_hbm [thread:$0]  %s402, 256, %s2, [#allocation4]
    $region21: #{tpu_custom_call.1} parent=1 // pred_fallthru
      _
    // Predicated region
    $region22: #{tpu_custom_call.1} parent=1 // pred_check
      _
    $region23: #{tpu_custom_call.1} parent=1 // pred_check_branch
      %406 = sbr.rel (0) target = $region25
    $region24: #{tpu_custom_call.1} parent=1 // pred_region
      %407 = dma.done [#allocation4], 256
    $region25: #{tpu_custom_call.1} parent=1 // pred_fallthru
      _
    %408 = vsyncpa [#allocation3], 1
    %409 = vsyncpa [#allocation6], 1
    %410 = vsyncpa [#allocation4], 1

</llo_original>
